<compile_context>
chip_gen: v6e
topology: v6e:2x2x1
jax: 0.10.0
libtpu: 0.0.40
codegen_flags: <defaults>
</compile_context>

<pallas_src>
import jax
import jax.numpy as jnp
from jax.experimental import pallas as pl
from jax.experimental.pallas import tpu as pltpu


def _score_kernel(x_ref, wt_ref, o_ref):
    # Autocast the hidden tile to the weight dtype (float32), matmul on the MXU
    # with f32 accumulation, then cast the result down to the output dtype.
    x = x_ref[...].astype(wt_ref.dtype)                               # (tm, H) f32
    y = jnp.dot(x, wt_ref[...], preferred_element_type=jnp.float32)   # (tm, C) f32
    o_ref[...] = y.astype(o_ref.dtype)


def _pick_row_tile(n_rows, hidden, x_itemsize, n_classes, *, vmem_budget=32 << 20):
    """Largest row tile (multiple of 16, capped at 1024) fitting the VMEM budget."""
    lane_c = max(n_classes, 128)  # minor dim is lane-padded to 128 in VMEM
    # Per-row bytes: 2 double-buffered input tiles + the f32 cast temp
    # + double-buffered bf16 output tile.
    bytes_per_row = 2 * hidden * x_itemsize + 4 * hidden + 2 * 2 * lane_c
    # Resident (H, C) f32 weight (lane-padded, double-buffered).
    weight_bytes = 2 * (-(-hidden // 8) * 8) * lane_c * 4
    avail = max(vmem_budget - weight_bytes, 1 << 20)
    tm = max(16, min(1024, (avail // bytes_per_row) // 16 * 16))
    # Keep at least 2 grid steps when there is enough work (v7x: 2 TensorCores).
    while tm > 16 and -(-n_rows // tm) < 2:
        tm = max(16, (tm // 2) // 16 * 16)
    return tm


def auto_casting_score(hiddens, weight, *, output_dtype=jnp.bfloat16, tm=None):
    """hiddens: (B, S, H) any float dtype; weight: (C, H) float32 -> (B, S, C) bf16."""
    B, S, H = hiddens.shape
    C, Hw = weight.shape
    assert H == Hw
    N = B * S

    x2d = hiddens.reshape(N, H)
    # Hoist the transpose out of the kernel: one-time XLA op, no per-step XLU work.
    w_t = weight.astype(jnp.float32).T                                # (H, C)

    if tm is None:
        tm = _pick_row_tile(N, H, x2d.dtype.itemsize, C)

    # Pad the row count so the perf-optimal tile divides it; slice afterwards.
    n_pad = pl.cdiv(N, tm) * tm
    if n_pad != N:
        x2d = jnp.pad(x2d, ((0, n_pad - N), (0, 0)))

    out = pl.pallas_call(
        _score_kernel,
        out_shape=jax.ShapeDtypeStruct((n_pad, C), output_dtype),
        grid_spec=pltpu.PrefetchScalarGridSpec(
            num_scalar_prefetch=0,
            grid=(n_pad // tm,),
            in_specs=[
                pl.BlockSpec((tm, H), lambda i: (i, 0)),   # row tile of hiddens
                pl.BlockSpec((H, C), lambda i: (0, 0)),    # resident weight.T
            ],
            out_specs=pl.BlockSpec((tm, C), lambda i: (i, 0)),
        ),
        compiler_params=pltpu.CompilerParams(
            dimension_semantics=("parallel",),
            vmem_limit_bytes=64 << 20,
        ),
    )(x2d, w_t)

    if n_pad != N:
        out = out[:N]
    return out.reshape(B, S, C)


if __name__ == "__main__":
    # Small shapes consistent with a score head: batch=2, seq=8, hidden=32, labels=2.
    B, S, H, C = 2, 8, 32, 2

    key = jax.random.PRNGKey(0)
    k_x, k_w = jax.random.split(key)

    # hiddens come in bf16 (get autocast to float32 inside the kernel)
    hiddens = jax.random.normal(k_x, (B, S, H), dtype=jnp.float32).astype(jnp.bfloat16)
    # score.weight stored as a float32 parameter (as in the module's __init__)
    weight = jax.random.normal(k_w, (C, H), dtype=jnp.float32) * 0.02

    out = auto_casting_score(hiddens, weight)
    out = jax.block_until_ready(out)

    # Reference check in plain JAX (same semantics as torch.nn.functional.linear).
    ref = (hiddens.astype(jnp.float32) @ weight.T).astype(jnp.bfloat16)
    assert out.shape == (B, S, C)
    assert out.dtype == jnp.bfloat16
    assert jnp.allclose(out.astype(jnp.float32), ref.astype(jnp.float32),
                        atol=1e-2, rtol=1e-2)

    print("KERNEL_OK")
</pallas_src>

<mosaic_0001>
module attributes {stable_mosaic.version = 11 : i64} {
  func.func @_score_kernel(%arg0: i32, %arg1: memref<16x32xbf16, #tpu.memory_space<vmem>>, %arg2: memref<32x2xf32, #tpu.memory_space<vmem>>, %arg3: memref<16x2xbf16, #tpu.memory_space<vmem>>) attributes {dimension_semantics = [#tpu.dimension_semantics<parallel>], iteration_bounds = array<i64: 1>, scalar_prefetch = 0 : i64, scratch_operands = 0 : i64, tpu.core_type = #tpu.core_type<tc>, window_params = [{transform_indices = @transform_0, window_bounds = array<i64: 16, 32>}, {pipeline_mode = #tpu.pipeline_mode<synchronous>, transform_indices = @transform_1, window_bounds = array<i64: 32, 2>}, {transform_indices = @transform_2, window_bounds = array<i64: 16, 2>}]} {
    %c0 = arith.constant 0 : index
    %c0_0 = arith.constant 0 : index
    %0 = vector.load %arg1[%c0, %c0_0] : memref<16x32xbf16, #tpu.memory_space<vmem>>, vector<16x32xbf16>
    %1 = arith.extf %0 : vector<16x32xbf16> to vector<16x32xf32>
    %c0_1 = arith.constant 0 : index
    %c0_2 = arith.constant 0 : index
    %2 = vector.load %arg2[%c0_1, %c0_2] : memref<32x2xf32, #tpu.memory_space<vmem>>, vector<32x2xf32>
    %cst = arith.constant dense<0.000000e+00> : vector<16x2xf32>
    %3 = tpu.matmul %1, %2, %cst {dimension_numbers = #tpu.dot_dimension_numbers<[1], [0], [0], [1], [0, 0, 1, 1], [], []>} : vector<16x32xf32>, vector<32x2xf32>, vector<16x2xf32> -> vector<16x2xf32>
    %4 = arith.truncf %3 : vector<16x2xf32> to vector<16x2xbf16>
    %c0_3 = arith.constant 0 : index
    %c0_4 = arith.constant 0 : index
    %5 = vector.load %arg3[%c0_3, %c0_4] : memref<16x2xbf16, #tpu.memory_space<vmem>>, vector<16x2xbf16>
    tpu.vector_store %arg3[%c0_3, %c0_4], %4 {strides = array<i32>} : memref<16x2xbf16, #tpu.memory_space<vmem>>, vector<16x2xbf16>,
    return
  }
  func.func @transform_0(%arg0: i32) -> (i32, i32) {
    %c0_i32 = arith.constant 0 : i32
    %c0_i32_0 = arith.constant 0 : i32
    return %arg0, %c0_i32 : i32, i32
  }
  func.func @transform_1(%arg0: i32) -> (i32, i32) {
    %c0_i32 = arith.constant 0 : i32
    %c0_i32_0 = arith.constant 0 : i32
    %c0_i32_1 = arith.constant 0 : i32
    return %c0_i32, %c0_i32_0 : i32, i32
  }
  func.func @transform_2(%arg0: i32) -> (i32, i32) {
    %c0_i32 = arith.constant 0 : i32
    %c0_i32_0 = arith.constant 0 : i32
    return %arg0, %c0_i32 : i32, i32
  }
}

</mosaic_0001>

<llo_original>
// kernel: tpu_custom_call.1
$region0: #{tpu_custom_call.1}
  #allocation0 [shape = 'u32[]', space=smem, size = 0x4, offset = 0x4, fixed_abs, tag = 'smem constant byte address 0x4 - core index']
  #allocation1 [shape = 'u32[144,128]{1,0:T(1,128)}', space=vmem, size = 0x12000, scoped, tag = 'internal scratch']
  %s0 = inlined_call_operand.vmem [shape: bf16[16,32], index: 0, kind: input, shape index: {}]
  %s1 = inlined_call_operand.vmem [shape: f32[32,2], index: 1, kind: input, shape index: {}]
  %s2 = inlined_call_operand.vmem [shape: bf16[16,2], index: 2, kind: output, shape index: {}]
  %s3 = sld [smem:[#allocation0]]
  $region18: #{tpu_custom_call.1} parent=0
    _
  %s5 = ssub.s32 1, %s3
  %s6 = scalar_select 0, %s5, %s3
  // Predicated region
  $region2: #{tpu_custom_call.1} parent=0 // pred_check
    _
  $region3: #{tpu_custom_call.1} parent=0 // pred_check_branch
    %8 = sbr.rel (0) target = $region5
  $region4: #{tpu_custom_call.1} parent=0 // pred_region
    _
  $region5: #{tpu_custom_call.1} parent=0 // pred_fallthru
    _
  // Predicated region
  $region6: #{tpu_custom_call.1} parent=0 // pred_check
    _
  $region7: #{tpu_custom_call.1} parent=0 // pred_check_branch
    %10 = sbr.rel (0) target = $region9
  $region8: #{tpu_custom_call.1} parent=0 // pred_region
    _
  $region9: #{tpu_custom_call.1} parent=0 // pred_fallthru
    _
  %v11 = vld [vmem:[%s0] sm:$0xf]
  %v12 = vld [vmem:[%s0 + $0x4] sm:$0xf]
  %v13 = vunpack.c.l.bf16 %v11
  %v14 = vunpack.c.l.bf16 %v12
  %v15 = vld [vmem:[%s1] sm:$0xff]
  %v16 = vld [vmem:[%s1 + $0x8] sm:$0xff]
  %v17 = vld [vmem:[%s1 + $0x10] sm:$0xff]
  %v18 = vld [vmem:[%s1 + $0x18] sm:$0xff]
  %vm19 = vcmask 261120
  %v21 = vsel %vm19, %v13, 0
  %v24 = vsel %vm19, %v14, 0
  %26 = vmatprep.subr.mxu0 0.0
  %27 = vmatpush1.msra.mxu0 0.0
  %28 = vmatprep.subr.mxu0 0.0
  %29 = vmatpush1.msra.mxu0 0.0
  %30 = vmatprep.subr.mxu0 0.0
  %31 = vmatpush1.msra.mxu0 0.0
  %32 = vmatprep.subr.mxu0 0.0
  %33 = vmatpush1.msra.mxu0 0.0
  %34 = vmatprep.subr.mxu0 0.0
  %35 = vmatpush1.msra.mxu0 0.0
  %36 = vmatprep.subr.mxu0 0.0
  %37 = vmatpush1.msra.mxu0 0.0
  %38 = vmatprep.subr.mxu0 0.0
  %39 = vmatpush1.msra.mxu0 0.0
  %40 = vmatprep.subr.mxu0 0.0
  %41 = vmatpush1.msra.mxu0 0.0
  %42 = vmatprep.subr.mxu0 0.0
  %43 = vmatpush1.msra.mxu0 0.0
  %44 = vmatprep.subr.mxu0 0.0
  %45 = vmatpush1.msra.mxu0 0.0
  %46 = vmatprep.subr.mxu0 0.0
  %47 = vmatpush1.msra.mxu0 0.0
  %48 = vmatprep.subr.mxu0 0.0
  %49 = vmatpush1.msra.mxu0 0.0
  %50 = vmatprep.subr.mxu0 0.0
  %51 = vmatpush1.msra.mxu0 %v18
  %52 = vmatprep.subr.mxu0 0.0
  %53 = vmatpush1.msra.mxu0 %v17
  %54 = vmatprep.subr.mxu0 0.0
  %55 = vmatpush1.msra.mxu0 %v16
  %56 = vmatprep.subr.mxu0 0.0
  %57 = vmatpush1.msra.mxu0 %v15
  %58 = vmatprep.subr.mxu0 0.0
  %59 = vmatpush2.msra.mxu0 0.0
  %60 = vmatprep.subr.mxu0 0.0
  %61 = vmatpush2.msra.mxu0 0.0
  %62 = vmatprep.subr.mxu0 0.0
  %63 = vmatpush2.msra.mxu0 0.0
  %64 = vmatprep.subr.mxu0 0.0
  %65 = vmatpush2.msra.mxu0 0.0
  %66 = vmatprep.subr.mxu0 0.0
  %67 = vmatpush2.msra.mxu0 0.0
  %68 = vmatprep.subr.mxu0 0.0
  %69 = vmatpush2.msra.mxu0 0.0
  %70 = vmatprep.subr.mxu0 0.0
  %71 = vmatpush2.msra.mxu0 0.0
  %72 = vmatprep.subr.mxu0 0.0
  %73 = vmatpush2.msra.mxu0 0.0
  %74 = vmatprep.subr.mxu0 0.0
  %75 = vmatpush2.msra.mxu0 0.0
  %76 = vmatprep.subr.mxu0 0.0
  %77 = vmatpush2.msra.mxu0 0.0
  %78 = vmatprep.subr.mxu0 0.0
  %79 = vmatpush2.msra.mxu0 0.0
  %80 = vmatprep.subr.mxu0 0.0
  %81 = vmatpush2.msra.mxu0 0.0
  %82 = vmatprep.subr.mxu0 0.0
  %83 = vmatpush2.msra.mxu0 0.0
  %84 = vmatprep.subr.mxu0 0.0
  %85 = vmatpush2.msra.mxu0 0.0
  %86 = vmatprep.subr.mxu0 0.0
  %87 = vmatpush2.msra.mxu0 0.0
  %88 = vmatprep.subr.mxu0 0.0
  %89 = vmatpush2.msra.mxu0 0.0
  %90 = vmatprep.mubr.f32.mxu0 0.0
  %91 = vmatmul.mubr.f32.gmra.mxu0 %v21
  %v92 = vpop.f32.mrf.mxu0
  %v93 = vadd.f32 0.0, %v92
  %v94 = vpop.f32.mrf.mxu0
  %95 = vmatprep.mubr.f32.mxu0 0.0
  %96 = vmatmul.mubr.f32.gmra.mxu0 %v24
  %v97 = vpop.f32.mrf.mxu0
  %v98 = vadd.f32 0.0, %v97
  %v99 = vpop.f32.mrf.mxu0
  %100 = vdwg.mxu0
  %v101 = vpack.c.bf16 %v98, %v93
  %v103 = vunpack.c.l.b16 %v101
  %v104 = vunpack.c.h.b16 %v101
  %v105 = vpack.c.b16 %v103, %v103
  %v106 = vpack.c.b16 %v104, %v104
  %vm109 = vcmask 11264
  %110 = vst.msk [vmem:[%s2] sm:$0xf] %vm109, %v105
  %111 = vst.msk [vmem:[%s2 + $0x4] sm:$0xf] %vm109, %v106
  // Predicated region
  $region10: #{tpu_custom_call.1} parent=0 // pred_check
    _
  $region11: #{tpu_custom_call.1} parent=0 // pred_check_branch
    %113 = sbr.rel (0) target = $region13
  $region12: #{tpu_custom_call.1} parent=0 // pred_region
    _
  $region13: #{tpu_custom_call.1} parent=0 // pred_fallthru
    _
  // Predicated region
  $region14: #{tpu_custom_call.1} parent=0 // pred_check
    _
  $region15: #{tpu_custom_call.1} parent=0 // pred_check_branch
    %115 = sbr.rel (0) target = $region17
  $region16: #{tpu_custom_call.1} parent=0 // pred_region
    _
  $region17: #{tpu_custom_call.1} parent=0 // pred_fallthru
    _

</llo_original>
